<compile_context>
chip_gen: v7x
topology: tpu7x:2x2x1
jax: 0.10.0
libtpu: 0.0.40
codegen_flags: <defaults>
</compile_context>

<pallas_src>
import jax
import jax.numpy as jnp
from jax.experimental import pallas as pl
from jax.experimental.pallas import tpu as pltpu


def _conv_gemm_sigmoid_kernel(w_ref, p_ref, o_ref):
    # w_ref: (Cout, Kc)  folded conv weights (+ bias column), resident block
    # p_ref: (Kc, TR)    transposed im2col patch tile (+ row of ones)
    # o_ref: (Cout, TR)  lane-dense output tile (TR is a multiple of 128)
    acc = jnp.dot(w_ref[...], p_ref[...], preferred_element_type=jnp.float32)
    o_ref[...] = jax.nn.sigmoid(acc).astype(o_ref.dtype)


def _choose_col_tile(total_cols, max_tile=4096):
    """Widest 128-multiple divisor of total_cols <= max_tile, preferring at
    least 2 grid steps (pipelining / v7x dual-TC); falls back to one full
    block (block dims == array dims is always legal)."""
    cands = sorted((t for t in range(128, min(total_cols, max_tile) + 1, 128)
                    if total_cols % t == 0), reverse=True)
    for min_steps in (2, 1):
        for t in cands:
            if total_cols // t >= min_steps:
                return t
    return total_cols


def conv2d_sigmoid(x_nchw, weight_oihw, bias, padding=1):
    """x: (N, Cin, H, W); weight: (Cout, Cin, KH, KW); bias: (Cout,) -> NCHW."""
    N, Cin, H, W = x_nchw.shape
    Cout, Cin_w, KH, KW = weight_oihw.shape
    assert Cin == Cin_w
    Ho = H + 2 * padding - KH + 1
    Wo = W + 2 * padding - KW + 1
    assert Ho > 0 and Wo > 0

    # ------- plain-JAX glue: layout, padding, im2col (gathers/reshapes only) -------
    x_nhwc = jnp.transpose(x_nchw, (0, 2, 3, 1))
    xp = jnp.pad(x_nhwc, ((0, 0), (padding, padding), (padding, padding), (0, 0)))
    taps = [xp[:, kh:kh + Ho, kw:kw + Wo, :]            # (N, Ho, Wo, Cin) each
            for kh in range(KH) for kw in range(KW)]
    cols = N * Ho * Wo
    patches = jnp.concatenate(taps, axis=-1).reshape(cols, KH * KW * Cin)
    patches_t = jnp.concatenate(                        # (Kc, cols), bias row of 1s
        [patches.T, jnp.ones((1, cols), patches.dtype)], axis=0)
    w2d = jnp.transpose(weight_oihw, (0, 2, 3, 1)).reshape(Cout, KH * KW * Cin)
    w_folded = jnp.concatenate(                         # (Cout, Kc), bias folded in
        [w2d, bias.reshape(Cout, 1).astype(w2d.dtype)], axis=1)
    Kc = KH * KW * Cin + 1

    # ----------------------------------- Pallas ------------------------------------
    tr = _choose_col_tile(cols)
    assert cols % tr == 0
    grid = (cols // tr,)
    out_itemsize = jnp.dtype(x_nchw.dtype).itemsize
    cost = pl.CostEstimate(
        flops=2 * cols * Kc * Cout,
        transcendentals=cols * Cout,
        bytes_accessed=(patches_t.size * patches_t.dtype.itemsize
                        + w_folded.size * w_folded.dtype.itemsize
                        + cols * Cout * out_itemsize),
    )

    out_slab = pl.pallas_call(
        _conv_gemm_sigmoid_kernel,
        out_shape=jax.ShapeDtypeStruct((Cout, cols), x_nchw.dtype),
        grid_spec=pltpu.PrefetchScalarGridSpec(
            num_scalar_prefetch=0,
            grid=grid,
            in_specs=[
                pl.BlockSpec((Cout, Kc), lambda i: (0, 0)),   # weights (stay resident)
                pl.BlockSpec((Kc, tr), lambda i: (0, i)),     # patch column tile
            ],
            out_specs=pl.BlockSpec((Cout, tr), lambda i: (0, i)),
        ),
        compiler_params=pltpu.CompilerParams(
            dimension_semantics=("parallel",)),
        cost_estimate=cost,
    )(w_folded, patches_t)

    # (Cout, N*Ho*Wo) lane-dense slab -> NCHW
    return jnp.transpose(out_slab.reshape(Cout, N, Ho, Wo), (1, 0, 2, 3))


class MyModuleJAX:
    """JAX mirror of the PyTorch MyModule.  (self.weight / self.bias are extra
    parameters the reference forward() never uses; kept for parity.)"""

    def __init__(self, in_channels, out_channels, kernel_size, key):
        k0, k1, k2, k3 = jax.random.split(key, 4)
        fan_in = in_channels * kernel_size * kernel_size
        bound = 1.0 / (fan_in ** 0.5)
        self.conv_weight = jax.random.uniform(
            k0, (out_channels, in_channels, kernel_size, kernel_size),
            jnp.float32, -bound, bound)
        self.conv_bias = jax.random.uniform(
            k1, (out_channels,), jnp.float32, -bound, bound)
        # unused extra parameters (torch.randn equivalents), kept for parity
        self.weight = jax.random.normal(
            k2, (out_channels, in_channels, kernel_size, kernel_size), jnp.float32)
        self.bias = jax.random.normal(k3, (out_channels,), jnp.float32)

    def __call__(self, x):
        return conv2d_sigmoid(x, self.conv_weight, self.conv_bias, padding=1)


if __name__ == "__main__":
    key = jax.random.PRNGKey(0)
    kx, kp = jax.random.split(key)

    N, Cin, Cout, H, W, K = 2, 4, 8, 16, 16, 3
    x = jax.random.normal(kx, (N, Cin, H, W), jnp.float32)

    mod = MyModuleJAX(Cin, Cout, K, kp)
    out = jax.block_until_ready(mod(x))

    # sanity check against lax conv reference
    ref = jax.lax.conv_general_dilated(
        x, mod.conv_weight, window_strides=(1, 1), padding=((1, 1), (1, 1)),
        dimension_numbers=("NCHW", "OIHW", "NCHW"))
    ref = jax.nn.sigmoid(ref + mod.conv_bias.reshape(1, Cout, 1, 1))
    assert out.shape == (N, Cout, H, W)
    assert jnp.max(jnp.abs(out - ref)) < 1e-5

    print("KERNEL_OK")
</pallas_src>

<mosaic_0001>
module attributes {stable_mosaic.version = 11 : i64} {
  func.func @_conv_gemm_sigmoid_kernel(%arg0: i32, %arg1: memref<8x37xf32, #tpu.memory_space<vmem>>, %arg2: memref<37x256xf32, #tpu.memory_space<vmem>>, %arg3: memref<8x256xf32, #tpu.memory_space<vmem>>) attributes {dimension_semantics = [#tpu.dimension_semantics<parallel>], iteration_bounds = array<i64: 2>, scalar_prefetch = 0 : i64, scratch_operands = 0 : i64, tpu.core_type = #tpu.core_type<tc>, window_params = [{pipeline_mode = #tpu.pipeline_mode<synchronous>, transform_indices = @transform_0, window_bounds = array<i64: 8, 37>}, {transform_indices = @transform_1, window_bounds = array<i64: 37, 256>}, {transform_indices = @transform_2, window_bounds = array<i64: 8, 256>}]} {
    %c0 = arith.constant 0 : index
    %c0_0 = arith.constant 0 : index
    %0 = vector.load %arg1[%c0, %c0_0] : memref<8x37xf32, #tpu.memory_space<vmem>>, vector<8x37xf32>
    %c0_1 = arith.constant 0 : index
    %c0_2 = arith.constant 0 : index
    %1 = vector.load %arg2[%c0_1, %c0_2] : memref<37x256xf32, #tpu.memory_space<vmem>>, vector<37x256xf32>
    %cst = arith.constant dense<0.000000e+00> : vector<8x256xf32>
    %2 = tpu.matmul %0, %1, %cst {dimension_numbers = #tpu.dot_dimension_numbers<[1], [0], [0], [1], [0, 0, 1, 1], [], []>} : vector<8x37xf32>, vector<37x256xf32>, vector<8x256xf32> -> vector<8x256xf32>
    %3 = arith.negf %2 : vector<8x256xf32>
    %4 = math.exp %3 : vector<8x256xf32>
    %cst_3 = arith.constant 1.000000e+00 : f32
    %5 = vector.broadcast %cst_3 : f32 to vector<8x256xf32>
    %6 = arith.addf %5, %4 : vector<8x256xf32>
    %7 = arith.divf %5, %6 : vector<8x256xf32>
    %c0_4 = arith.constant 0 : index
    %c0_5 = arith.constant 0 : index
    %8 = vector.load %arg3[%c0_4, %c0_5] : memref<8x256xf32, #tpu.memory_space<vmem>>, vector<8x256xf32>
    tpu.vector_store %arg3[%c0_4, %c0_5], %7 {strides = array<i32>} : memref<8x256xf32, #tpu.memory_space<vmem>>, vector<8x256xf32>,
    return
  }
  func.func @transform_0(%arg0: i32) -> (i32, i32) {
    %c0_i32 = arith.constant 0 : i32
    %c0_i32_0 = arith.constant 0 : i32
    %c0_i32_1 = arith.constant 0 : i32
    return %c0_i32, %c0_i32_0 : i32, i32
  }
  func.func @transform_1(%arg0: i32) -> (i32, i32) {
    %c0_i32 = arith.constant 0 : i32
    %c0_i32_0 = arith.constant 0 : i32
    return %c0_i32, %arg0 : i32, i32
  }
  func.func @transform_2(%arg0: i32) -> (i32, i32) {
    %c0_i32 = arith.constant 0 : i32
    %c0_i32_0 = arith.constant 0 : i32
    return %c0_i32, %arg0 : i32, i32
  }
}

</mosaic_0001>

<llo_original>
// kernel: tpu_custom_call.1
$region0: #{tpu_custom_call.1}
  #allocation0 [shape = 'u32[]', space=smem, size = 0x4, offset = 0x4, fixed_abs, tag = 'smem constant byte address 0x4 - core index']
  #allocation1 [shape = 'u32[144,128]{1,0:T(1,128)}', space=vmem, size = 0x12000, scoped, tag = 'internal scratch']
  %s0 = inlined_call_operand.hbm [shape: f32[8,37], index: 0, kind: input, shape index: {}]
  %s1 = inlined_call_operand.hbm [shape: f32[37,512], index: 1, kind: input, shape index: {}]
  %s2 = inlined_call_operand.hbm [shape: f32[8,512], index: 2, kind: output, shape index: {}]
  %s3 = sld [smem:[#allocation0]]
  $region49: #{tpu_custom_call.1} parent=0
    _
  %s5 = ssub.s32 1, %s3
  %s6 = scalar_select 0, %s5, %s3
  $region1: #{tpu_custom_call.1} parent=0
    #allocation2 [shape = 'u8[4096]{0}', space=vmem, size = 0x1000, scoped, tag = 'input window, operand 0, single buffered']
    #allocation3 [shape = 's32[2]{0}', space=sflag, size = 0x8, scoped, tag = 'scoped memory for tpu_custom_call.1']
    #allocation4 [shape = 's32[2]{0}', space=sflag, size = 0x8, scoped, tag = 'scoped memory for tpu_custom_call.1']
    #allocation5 [shape = 'u8[81920]{0}', space=vmem, size = 0x14000, scoped, tag = 'input window, operand 1']
    #allocation6 [shape = 's32[2]{0}', space=sflag, size = 0x8, scoped, tag = 'scoped memory for tpu_custom_call.1']
    #allocation7 [shape = 'u8[16384]{0}', space=vmem, size = 0x4000, scoped, tag = 'output window, operand 0']
    %7 = vsyncpa [#allocation3], 0
    %8 = vsyncpa [#allocation6], 0
    %s9 = scalar_lea.sflag [#allocation6], 1
    %10 = vsyncpa %s9, 0
    %11 = vsyncpa [#allocation4], 0
    %s12 = scalar_lea.sflag [#allocation4], 1
    %13 = vsyncpa %s12, 0
    loop: start=0, step=1, limit=4
    $region2: #{tpu_custom_call.1} parent=1 // loop_pre_header
      _
    $region3: #{tpu_custom_call.1} parent=1 // loop_header
      %s15 = sphi 0, %s19
      %p16 = scmp.ge.s32.totalorder %s15, 4
      %s23 = sphi 0, %s23
      %s25 = sphi 0, %s23
      %s26 = sphi 0, %s25
      %s40 = sphi 0, %s26
      %s46 = sphi 0, %s48
      %s49 = sphi 0, %s46
      %s50 = sphi 0, %s49
      %s66 = sphi 0, %s50
      %s72 = sphi 0, %s74
      %s75 = sphi 0, %s72
      %s76 = sphi 0, %s75
      %s92 = sphi 0, %s76
    $region4: #{tpu_custom_call.1} parent=1 // loop_header_branch
      %18 = sbr.rel (%p16) target = $region8
    $region5: #{tpu_custom_call.1} parent=1 // loop_body
      %s20 = ssub.s32 %s15, 1
      %s21 = ssub.s32 %s15, 2
      %s22 = sadd.s32 %s15, 1
      %s24 = sadd.s32 %s23, 1
      %p27 = scmp.eq.s32.totalorder %s15, 1
      %p28 = scmp.ne.s32.totalorder %s23, %s25
      %p29 = scmp.eq.s32.totalorder %s15, 0
      %p30 = por %p28, %p29
      %p31 = scmp.ne.s32.totalorder %s23, %s25
      %p32 = scmp.eq.s32.totalorder %s20, 1
      %p33 = por %p31, %p32
      %p34 = scmp.ne.s32.totalorder %s25, %s26
      %p35 = scmp.eq.s32.totalorder %s20, 0
      %p36 = por %p34, %p35
      %p37 = scmp.ne.s32.totalorder %s25, %s26
      %p38 = scmp.eq.s32.totalorder %s21, 1
      %p39 = por %p37, %p38
      %p41 = scmp.ne.s32.totalorder %s26, %s40
      %p42 = scmp.eq.s32.totalorder %s21, 0
      %p43 = por %p41, %p42
      %s44 = ssub.s32 %s15, %s22
      %p45 = scmp.eq.s32.totalorder %s44, 0
      %s47 = sadd.s32 %s46, 1
      %s48 = scalar_select %p45, %s46, %s47
      %p51 = pneg %p45
      %p52 = scmp.eq.s32.totalorder %s15, 1
      %p53 = por %p51, %p52
      %p54 = scmp.ne.s32.totalorder %s46, %s49
      %p55 = scmp.eq.s32.totalorder %s15, 0
      %p56 = por %p54, %p55
      %p57 = scmp.ne.s32.totalorder %s46, %s49
      %p58 = scmp.eq.s32.totalorder %s20, 1
      %p59 = por %p57, %p58
      %p60 = scmp.ne.s32.totalorder %s49, %s50
      %p61 = scmp.eq.s32.totalorder %s20, 0
      %p62 = por %p60, %p61
      %p63 = scmp.ne.s32.totalorder %s49, %s50
      %p64 = scmp.eq.s32.totalorder %s21, 1
      %p65 = por %p63, %p64
      %p67 = scmp.ne.s32.totalorder %s50, %s66
      %p68 = scmp.eq.s32.totalorder %s21, 0
      %p69 = por %p67, %p68
      %s70 = ssub.s32 %s15, %s22
      %p71 = scmp.eq.s32.totalorder %s70, 0
      %s73 = sadd.s32 %s72, 1
      %s74 = scalar_select %p71, %s72, %s73
      %p77 = pneg %p71
      %p78 = scmp.eq.s32.totalorder %s15, 1
      %p79 = por %p77, %p78
      %p80 = scmp.ne.s32.totalorder %s72, %s75
      %p81 = scmp.eq.s32.totalorder %s15, 0
      %p82 = por %p80, %p81
      %p83 = scmp.ne.s32.totalorder %s72, %s75
      %p84 = scmp.eq.s32.totalorder %s20, 1
      %p85 = por %p83, %p84
      %p86 = scmp.ne.s32.totalorder %s75, %s76
      %p87 = scmp.eq.s32.totalorder %s20, 0
      %p88 = por %p86, %p87
      %p89 = scmp.ne.s32.totalorder %s75, %s76
      %p90 = scmp.eq.s32.totalorder %s21, 1
      %p91 = por %p89, %p90
      %p93 = scmp.ne.s32.totalorder %s76, %s92
      %p94 = scmp.eq.s32.totalorder %s21, 0
      %p95 = por %p93, %p94
      %p96 = scmp.le.s32.totalorder 1, %s15
      %p97 = scmp.lt.s32.totalorder %s15, 3
      %p98 = pnand %p96, %p97
      %p99 = pneg %p98
      // Predicated region
      $region9: #{tpu_custom_call.1} parent=5 // pred_check
        _
      $region10: #{tpu_custom_call.1} parent=5 // pred_check_branch
        %101 = sbr.rel (%p98) target = $region12
      $region11: #{tpu_custom_call.1} parent=5 // pred_region
        %s102 = ssub.s32 %s15, 1
        // Predicated region
        $region13: #{tpu_custom_call.1} parent=11 // pred_check
          %p103 = pneg %p36
        $region14: #{tpu_custom_call.1} parent=11 // pred_check_branch
          %105 = sbr.rel (%p103) target = $region16
        $region15: #{tpu_custom_call.1} parent=11 // pred_region
          %s107 = ssub.s32 128, 128
          %108 = vsyncadd [#allocation3], %s107
          %s110 = sshll.u32 [#allocation2], 4
          %s111 = int_to_ptr.vmem [resolvable:$true] %s110
          %113 = dma.hbm_to_vmem [thread:$0]  %s0, 128, %s111, [#allocation3]
        $region16: #{tpu_custom_call.1} parent=11 // pred_fallthru
          _
      $region12: #{tpu_custom_call.1} parent=5 // pred_fallthru
        _
      %p114 = scmp.lt.s32.totalorder %s15, 2
      // Predicated region
      $region17: #{tpu_custom_call.1} parent=5 // pred_check
        %p115 = pneg %p114
      $region18: #{tpu_custom_call.1} parent=5 // pred_check_branch
        %117 = sbr.rel (%p115) target = $region20
      $region19: #{tpu_custom_call.1} parent=5 // pred_region
        // Predicated region
        $region21: #{tpu_custom_call.1} parent=19 // pred_check
          %p118 = pneg %p56
        $region22: #{tpu_custom_call.1} parent=19 // pred_check_branch
          %120 = sbr.rel (%p118) target = $region24
        $region23: #{tpu_custom_call.1} parent=19 // pred_region
          %s121 = sand.u32 %s46, 1
          %s122 = scalar_lea.sflag [#allocation6], %s121
          %s123 = sand.u32 %s46, 1
          %s124 = smul.addr %s123, 80
          %s125 = scalar_lea.vmem [#allocation5], %s124
          %s126 = smul.u32 2, %s15
          %s128 = ssub.s32 1280, 1280
          %129 = vsyncadd %s122, %s128
          %s130 = smul.addr %s126, 128
          %s131 = scalar_lea.hbm %s1, %s130
          %s132 = sshll.u32 %s125, 4
          %s133 = int_to_ptr.vmem [resolvable:$true] %s132
          %138 = dma.hbm_to_vmem [thread:$0]  %s131, 1280, %s133, %s122, 512, 256, 16
        $region24: #{tpu_custom_call.1} parent=19 // pred_fallthru
          _
      $region20: #{tpu_custom_call.1} parent=5 // pred_fallthru
        _
      %p139 = scmp.le.s32.totalorder 1, %s15
      %p140 = scmp.lt.s32.totalorder %s15, 3
      %p141 = pnand %p139, %p140
      %p142 = pneg %p141
      // Predicated region
      $region25: #{tpu_custom_call.1} parent=5 // pred_check
        _
      $region26: #{tpu_custom_call.1} parent=5 // pred_check_branch
        %144 = sbr.rel (%p141) target = $region28
      $region27: #{tpu_custom_call.1} parent=5 // pred_region
        %s145 = ssub.s32 %s15, 1
        // Predicated region
        $region29: #{tpu_custom_call.1} parent=27 // pred_check
          %p146 = pneg %p36
        $region30: #{tpu_custom_call.1} parent=27 // pred_check_branch
          %148 = sbr.rel (%p146) target = $region32
        $region31: #{tpu_custom_call.1} parent=27 // pred_region
          %149 = dma.done [#allocation3], 128
        $region32: #{tpu_custom_call.1} parent=27 // pred_fallthru
          _
        %s150 = sand.u32 %s49, 1
        %s151 = scalar_lea.sflag [#allocation6], %s150
        %s152 = sand.u32 %s49, 1
        %s153 = smul.addr %s152, 80
        %s154 = scalar_lea.vmem [#allocation5], %s153
        // Predicated region
        $region33: #{tpu_custom_call.1} parent=27 // pred_check
          %p155 = pneg %p62
        $region34: #{tpu_custom_call.1} parent=27 // pred_check_branch
          %157 = sbr.rel (%p155) target = $region36
        $region35: #{tpu_custom_call.1} parent=27 // pred_region
          %158 = dma.done %s151, 1280
        $region36: #{tpu_custom_call.1} parent=27 // pred_fallthru
          _
        %p159 = pneg %p36
        %p160 = pneg %p33
        %s161 = sand.u32 %s49, 1
        %s162 = scalar_lea.sflag [#allocation6], %s161
        %s163 = sand.u32 %s49, 1
        %s164 = smul.addr %s163, 80
        %s165 = scalar_lea.vmem [#allocation5], %s164
        %p166 = pneg %p62
        %p167 = pneg %p59
        %p168 = pneg %p88
        %p169 = pneg %p85
        %s170 = sand.u32 %s75, 1
        %s171 = scalar_lea.sflag [#allocation4], %s170
        %s172 = sand.u32 %s75, 1
        %s173 = smul.addr %s172, 16
        %s174 = scalar_lea.vmem [#allocation7], %s173
        %s175 = smul.u32 2, %s20
        %s176 = smul.u32 2, %s20
        %v177 = vld [vmem:[#allocation2] sm:$0xff]
        %v178 = vld [vmem:[%s154] sm:$0xff]
        %v179 = vld [vmem:[%s154 + $0x8] sm:$0xff]
        %v180 = vld [vmem:[%s154 + $0x10] sm:$0xff]
        %v181 = vld [vmem:[%s154 + $0x18] sm:$0xff]
        %v182 = vld [vmem:[%s154 + $0x20] sm:$0xff]
        %v183 = vld [vmem:[%s154 + $0x28] sm:$0xff]
        %v184 = vld [vmem:[%s154 + $0x30] sm:$0xff]
        %v185 = vld [vmem:[%s154 + $0x38] sm:$0xff]
        %v186 = vld [vmem:[%s154 + $0x40] sm:$0x1f]
        %v187 = vld [vmem:[%s154 + $0x48] sm:$0x1f]
        %vm188 = vcmask 302080
        %v190 = vsel %vm188, %v177, 0
        %vm192 = vcmask 1044480
        %v194 = vsel %vm192, %v186, 0
        %v197 = vsel %vm192, %v187, 0
        %199 = vmatprep.subr.mxu0 %v179
        %200 = vmatpush1.msra.mxu0 %v178
        %201 = vmatprep.subr.mxu0 %v181
        %202 = vmatpush1.msra.mxu0 %v180
        %203 = vmatprep.subr.mxu0 %v183
        %204 = vmatpush1.msra.mxu0 %v182
        %205 = vmatprep.subr.mxu0 %v185
        %206 = vmatpush1.msra.mxu0 %v184
        %207 = vmatprep.subr.mxu0 %v197
        %208 = vmatpush1.msra.mxu0 %v194
        %209 = vmatprep.subr.mxu0 0.0
        %210 = vmatpush1.msra.mxu0 0.0
        %211 = vmatprep.subr.mxu0 0.0
        %212 = vmatpush1.msra.mxu0 0.0
        %213 = vmatprep.subr.mxu0 0.0
        %214 = vmatpush1.msra.mxu0 0.0
        %215 = vmatprep.subr.mxu0 0.0
        %216 = vmatpush1.msra.mxu0 0.0
        %217 = vmatprep.subr.mxu0 0.0
        %218 = vmatpush1.msra.mxu0 0.0
        %219 = vmatprep.subr.mxu0 0.0
        %220 = vmatpush1.msra.mxu0 0.0
        %221 = vmatprep.subr.mxu0 0.0
        %222 = vmatpush1.msra.mxu0 0.0
        %223 = vmatprep.subr.mxu0 0.0
        %224 = vmatpush1.msra.mxu0 0.0
        %225 = vmatprep.subr.mxu0 0.0
        %226 = vmatpush1.msra.mxu0 0.0
        %227 = vmatprep.subr.mxu0 0.0
        %228 = vmatpush1.msra.mxu0 0.0
        %229 = vmatprep.subr.mxu0 0.0
        %230 = vmatpush1.msra.mxu0 0.0
        %231 = vmatprep.subr.mxu0 0.0
        %232 = vmatpush1.msra.mxu0 0.0
        %233 = vmatprep.subr.mxu0 0.0
        %234 = vmatpush1.msra.mxu0 0.0
        %235 = vmatprep.subr.mxu0 0.0
        %236 = vmatpush1.msra.mxu0 0.0
        %237 = vmatprep.subr.mxu0 0.0
        %238 = vmatpush1.msra.mxu0 0.0
        %239 = vmatprep.subr.mxu0 0.0
        %240 = vmatpush1.msra.mxu0 0.0
        %241 = vmatprep.subr.mxu0 0.0
        %242 = vmatpush1.msra.mxu0 0.0
        %243 = vmatprep.subr.mxu0 0.0
        %244 = vmatpush1.msra.mxu0 0.0
        %245 = vmatprep.subr.mxu0 0.0
        %246 = vmatpush1.msra.mxu0 0.0
        %247 = vmatprep.subr.mxu0 0.0
        %248 = vmatpush1.msra.mxu0 0.0
        %249 = vmatprep.subr.mxu0 0.0
        %250 = vmatpush1.msra.mxu0 0.0
        %251 = vmatprep.subr.mxu0 0.0
        %252 = vmatpush1.msra.mxu0 0.0
        %253 = vmatprep.subr.mxu0 0.0
        %254 = vmatpush1.msra.mxu0 0.0
        %255 = vmatprep.subr.mxu0 0.0
        %256 = vmatpush1.msra.mxu0 0.0
        %257 = vmatprep.subr.mxu0 0.0
        %258 = vmatpush1.msra.mxu0 0.0
        %259 = vmatprep.subr.mxu0 0.0
        %260 = vmatpush1.msra.mxu0 0.0
        %261 = vmatprep.subr.mxu0 0.0
        %262 = vmatpush1.msra.mxu0 0.0
        %263 = vmatprep.mubr.f32.mxu0 0.0
        %264 = vmatmul.mubr.f32.gmra.mrb[0].mxu0 %v190
        %v265 = vpop.f32.mrb[0].mxu0
        %v266 = vadd.f32 0.0, %v265
        %v267 = vpop.f32.mrb[0].mxu0
        %v268 = vadd.f32 0.0, %v267
        %269 = vdwg.mxu0
        %v270 = vxor.u32 %v266, 2147483648
        %v271 = vxor.u32 %v268, 2147483648
        %v272 = vmul.f32 %v270, 1.442695
        %v273 = vpow.pop %v272
        %v274 = vmul.f32 %v271, 1.442695
        %v275 = vpow.pop %v274
        %v276 = vadd.f32 %v273, 1.0
        %v277 = vadd.f32 %v275, 1.0
        %v278 = vrcp.pop %v276
        %v279 = vmul.f32 1.0, %v278
        %v280 = vrcp.pop %v277
        %v281 = vmul.f32 1.0, %v280
        %282 = vst [vmem:[%s174] sm:$0xff] %v279
        %283 = vst [vmem:[%s174 + $0x8] sm:$0xff] %v281
        %s284 = sand.u32 %s75, 1
        %s285 = scalar_lea.sflag [#allocation4], %s284
        %s286 = sand.u32 %s75, 1
        %s287 = smul.addr %s286, 16
        %s288 = scalar_lea.vmem [#allocation7], %s287
        // Predicated region
        $region37: #{tpu_custom_call.1} parent=27 // pred_check
          %p289 = pneg %p85
        $region38: #{tpu_custom_call.1} parent=27 // pred_check_branch
          %291 = sbr.rel (%p289) target = $region40
        $region39: #{tpu_custom_call.1} parent=27 // pred_region
          %s292 = smul.u32 2, %s20
          %s294 = ssub.s32 256, 256
          %295 = vsyncadd %s285, %s294
          %s296 = smul.addr %s292, 128
          %s297 = scalar_lea.hbm %s2, %s296
          %s299 = sshll.u32 %s288, 4
          %s300 = int_to_ptr.vmem [resolvable:$true] %s299
          %302 = dma.vmem_to_hbm [thread:$0]  %s300, 256, %s297, %s285
        $region40: #{tpu_custom_call.1} parent=27 // pred_fallthru
          _
      $region28: #{tpu_custom_call.1} parent=5 // pred_fallthru
        _
      %p303 = scmp.le.s32.totalorder 2, %s15
      // Predicated region
      $region41: #{tpu_custom_call.1} parent=5 // pred_check
        %p304 = pneg %p303
      $region42: #{tpu_custom_call.1} parent=5 // pred_check_branch
        %306 = sbr.rel (%p304) target = $region44
      $region43: #{tpu_custom_call.1} parent=5 // pred_region
        %s307 = ssub.s32 %s15, 2
        // Predicated region
        $region45: #{tpu_custom_call.1} parent=43 // pred_check
          %p308 = pneg %p91
        $region46: #{tpu_custom_call.1} parent=43 // pred_check_branch
          %310 = sbr.rel (%p308) target = $region48
        $region47: #{tpu_custom_call.1} parent=43 // pred_region
          %s311 = sand.u32 %s76, 1
          %s312 = scalar_lea.sflag [#allocation4], %s311
          %s313 = sand.u32 %s76, 1
          %s314 = smul.addr %s313, 16
          %s315 = scalar_lea.vmem [#allocation7], %s314
          %316 = dma.done %s312, 256
        $region48: #{tpu_custom_call.1} parent=43 // pred_fallthru
          _
      $region44: #{tpu_custom_call.1} parent=5 // pred_fallthru
        _
    $region6: #{tpu_custom_call.1} parent=1 // loop_footer
      %s19 = sadd.s32 1, %s15
    $region7: #{tpu_custom_call.1} parent=1 // loop_footer_branch
      %14 = sbr.rel target = $region3
    $region8: #{tpu_custom_call.1} parent=1 // loop_exit
      _
    %317 = vsyncpa [#allocation3], 1
    %s318 = scalar_lea.sflag [#allocation3], 1
    %319 = vsyncpa %s318, 1
    %320 = vsyncpa [#allocation6], 1
    %s321 = scalar_lea.sflag [#allocation6], 1
    %322 = vsyncpa %s321, 1
    %323 = vsyncpa [#allocation4], 1
    %s324 = scalar_lea.sflag [#allocation4], 1
    %325 = vsyncpa %s324, 1

</llo_original>
